<compile_context>
chip_gen: v6e
topology: v6e:2x2x1
jax: 0.10.0
libtpu: 0.0.40
codegen_flags: <defaults>
</compile_context>

<pallas_src>
import jax
import jax.numpy as jnp
from jax.experimental import pallas as pl
from jax.experimental.pallas import tpu as pltpu


def _value_net_kernel(xt_ref, w1_ref, b1_ref, w2_ref, b2_ref, out_ref):
    # xt: (S, TB)  batch-in-lanes tile of x^T
    # w1: (H, S)   PyTorch layout, used directly (no in-kernel transpose)
    # b1: (H, 1), w2: (H, 1), b2: (1, 1)
    # out: (1, TB) lane-dense value row
    h = jnp.dot(w1_ref[...], xt_ref[...], preferred_element_type=jnp.float32)  # (H, TB)
    h = jnp.maximum(h + b1_ref[...], 0.0)                                      # bias + ReLU (VPU)
    # fc2: broadcast-multiply (VPU) + sublane reduce (XLU) instead of an N=1 MXU matmul
    v = jnp.sum(h * w2_ref[...], axis=0, keepdims=True)                        # (1, TB)
    out_ref[...] = (v + b2_ref[...]).astype(out_ref.dtype)


def _round_up(a, m):
    return ((a + m - 1) // m) * m


def value_net_forward(x, w1, b1, w2, b2, *, tb=512):
    """x: (B, S); w1: (H, S); b1: (H,); w2: (1, H); b2: (1,). Returns (B, 1)."""
    B, S = x.shape
    H = w1.shape[0]

    x = x.astype(jnp.float32)
    w1 = w1.astype(jnp.float32)

    # Batch tile: one full-extent tile for small B; 128-lane-aligned tiles otherwise.
    if B <= tb:
        TB, B_pad = B, B
    else:
        TB = tb  # must be a multiple of 128 for lane-aligned tiles
        B_pad = _round_up(B, TB)
    num_tiles = B_pad // TB

    # Trace-time layout plumbing (free): transpose x once, reshape params to columns.
    x_t = x.T                                   # (S, B)
    if B_pad != B:
        x_t = jnp.pad(x_t, ((0, 0), (0, B_pad - B)))
    b1_col = b1.reshape(H, 1).astype(jnp.float32)
    w2_col = w2.reshape(H, 1).astype(jnp.float32)
    b2_2d = b2.reshape(1, 1).astype(jnp.float32)

    out_row = pl.pallas_call(
        _value_net_kernel,
        out_shape=jax.ShapeDtypeStruct((1, B_pad), jnp.float32),
        grid=(num_tiles,),
        in_specs=[
            pl.BlockSpec((S, TB), lambda i: (0, i)),   # x^T batch tile (batch in lanes)
            pl.BlockSpec((H, S), lambda i: (0, 0)),    # w1 resident across the grid
            pl.BlockSpec((H, 1), lambda i: (0, 0)),    # b1 resident
            pl.BlockSpec((H, 1), lambda i: (0, 0)),    # w2 resident
            pl.BlockSpec((1, 1), lambda i: (0, 0)),    # b2 resident
        ],
        out_specs=pl.BlockSpec((1, TB), lambda i: (0, i)),  # lane-dense output row
        compiler_params=pltpu.CompilerParams(
            dimension_semantics=("parallel",)),
    )(x_t, w1, b1_col, w2_col, b2_2d)

    return out_row[0, :B].reshape(B, 1).astype(x.dtype)


def reference_forward(x, w1, b1, w2, b2):
    h = jnp.maximum(x @ w1.T + b1, 0.0)
    return h @ w2.T + b2


if __name__ == "__main__":
    batch, state_dim, hidden_dim = 8, 4, 32

    key = jax.random.PRNGKey(0)
    kx, kw1, kb1, kw2, kb2 = jax.random.split(key, 5)

    x = jax.random.normal(kx, (batch, state_dim), dtype=jnp.float32)

    # Deterministic parameter init (same scale convention as nn.Linear)
    lim1 = 1.0 / (state_dim ** 0.5)
    w1 = jax.random.uniform(kw1, (hidden_dim, state_dim), jnp.float32, -lim1, lim1)
    b1 = jax.random.uniform(kb1, (hidden_dim,), jnp.float32, -lim1, lim1)
    lim2 = 1.0 / (hidden_dim ** 0.5)
    w2 = jax.random.uniform(kw2, (1, hidden_dim), jnp.float32, -lim2, lim2)
    b2 = jax.random.uniform(kb2, (1,), jnp.float32, -lim2, lim2)

    # Small-batch path (single full-extent tile)
    out = value_net_forward(x, w1, b1, w2, b2)
    jax.block_until_ready(out)
    ref = reference_forward(x, w1, b1, w2, b2)
    assert out.shape == (batch, 1)
    assert jnp.allclose(out, ref, atol=1e-5, rtol=1e-5)

    # Tiled path (batch grid, padding, resident weights)
    big_batch = 300
    xb = jax.random.normal(jax.random.PRNGKey(1), (big_batch, state_dim), jnp.float32)
    out_b = value_net_forward(xb, w1, b1, w2, b2, tb=128)
    jax.block_until_ready(out_b)
    ref_b = reference_forward(xb, w1, b1, w2, b2)
    assert out_b.shape == (big_batch, 1)
    assert jnp.allclose(out_b, ref_b, atol=1e-5, rtol=1e-5)

    print("KERNEL_OK")
</pallas_src>

<mosaic_0001>
module attributes {stable_mosaic.version = 11 : i64} {
  func.func @_value_net_kernel(%arg0: i32, %arg1: memref<4x8xf32, #tpu.memory_space<vmem>>, %arg2: memref<32x4xf32, #tpu.memory_space<vmem>>, %arg3: memref<32x1xf32, #tpu.memory_space<vmem>>, %arg4: memref<32x1xf32, #tpu.memory_space<vmem>>, %arg5: memref<1x1xf32, #tpu.memory_space<vmem>>, %arg6: memref<1x8xf32, #tpu.memory_space<vmem>>) attributes {dimension_semantics = [#tpu.dimension_semantics<parallel>], iteration_bounds = array<i64: 1>, scalar_prefetch = 0 : i64, scratch_operands = 0 : i64, tpu.core_type = #tpu.core_type<tc>, window_params = [{transform_indices = @transform_0, window_bounds = array<i64: 4, 8>}, {pipeline_mode = #tpu.pipeline_mode<synchronous>, transform_indices = @transform_1, window_bounds = array<i64: 32, 4>}, {pipeline_mode = #tpu.pipeline_mode<synchronous>, transform_indices = @transform_2, window_bounds = array<i64: 32, 1>}, {pipeline_mode = #tpu.pipeline_mode<synchronous>, transform_indices = @transform_3, window_bounds = array<i64: 32, 1>}, {pipeline_mode = #tpu.pipeline_mode<synchronous>, transform_indices = @transform_4, window_bounds = array<i64: 1, 1>}, {transform_indices = @transform_5, window_bounds = array<i64: 1, 8>}]} {
    %c0 = arith.constant 0 : index
    %c0_0 = arith.constant 0 : index
    %0 = vector.load %arg2[%c0, %c0_0] : memref<32x4xf32, #tpu.memory_space<vmem>>, vector<32x4xf32>
    %c0_1 = arith.constant 0 : index
    %c0_2 = arith.constant 0 : index
    %1 = vector.load %arg1[%c0_1, %c0_2] : memref<4x8xf32, #tpu.memory_space<vmem>>, vector<4x8xf32>
    %cst = arith.constant dense<0.000000e+00> : vector<32x8xf32>
    %2 = tpu.matmul %0, %1, %cst {dimension_numbers = #tpu.dot_dimension_numbers<[1], [0], [0], [1], [0, 0, 1, 1], [], []>} : vector<32x4xf32>, vector<4x8xf32>, vector<32x8xf32> -> vector<32x8xf32>
    %c0_3 = arith.constant 0 : index
    %c0_4 = arith.constant 0 : index
    %3 = vector.load %arg3[%c0_3, %c0_4] : memref<32x1xf32, #tpu.memory_space<vmem>>, vector<32x1xf32>
    %4 = vector.broadcast %3 : vector<32x1xf32> to vector<32x8xf32>
    %5 = arith.addf %2, %4 : vector<32x8xf32>
    %cst_5 = arith.constant 0.000000e+00 : f32
    %6 = vector.broadcast %cst_5 : f32 to vector<32x8xf32>
    %7 = arith.maximumf %5, %6 : vector<32x8xf32>
    %c0_6 = arith.constant 0 : index
    %c0_7 = arith.constant 0 : index
    %8 = vector.load %arg4[%c0_6, %c0_7] : memref<32x1xf32, #tpu.memory_space<vmem>>, vector<32x1xf32>
    %9 = vector.broadcast %8 : vector<32x1xf32> to vector<32x8xf32>
    %10 = arith.mulf %7, %9 : vector<32x8xf32>
    %cst_8 = arith.constant dense<0.000000e+00> : vector<8xf32>
    %11 = vector.multi_reduction <add>, %10, %cst_8 [0] : vector<32x8xf32> to vector<8xf32>
    %12 = vector.shape_cast %11 : vector<8xf32> to vector<1x8xf32>
    %c0_9 = arith.constant 0 : index
    %c0_10 = arith.constant 0 : index
    %13 = vector.load %arg5[%c0_9, %c0_10] : memref<1x1xf32, #tpu.memory_space<vmem>>, vector<1x1xf32>
    %14 = vector.broadcast %13 : vector<1x1xf32> to vector<1x8xf32>
    %15 = arith.addf %12, %14 : vector<1x8xf32>
    %c0_11 = arith.constant 0 : index
    %c0_12 = arith.constant 0 : index
    %16 = vector.load %arg6[%c0_11, %c0_12] : memref<1x8xf32, #tpu.memory_space<vmem>>, vector<1x8xf32>
    tpu.vector_store %arg6[%c0_11, %c0_12], %15 {strides = array<i32>} : memref<1x8xf32, #tpu.memory_space<vmem>>, vector<1x8xf32>,
    return
  }
  func.func @transform_0(%arg0: i32) -> (i32, i32) {
    %c0_i32 = arith.constant 0 : i32
    %c0_i32_0 = arith.constant 0 : i32
    return %c0_i32, %arg0 : i32, i32
  }
  func.func @transform_1(%arg0: i32) -> (i32, i32) {
    %c0_i32 = arith.constant 0 : i32
    %c0_i32_0 = arith.constant 0 : i32
    %c0_i32_1 = arith.constant 0 : i32
    return %c0_i32, %c0_i32_0 : i32, i32
  }
  func.func @transform_2(%arg0: i32) -> (i32, i32) {
    %c0_i32 = arith.constant 0 : i32
    %c0_i32_0 = arith.constant 0 : i32
    %c0_i32_1 = arith.constant 0 : i32
    return %c0_i32, %c0_i32_0 : i32, i32
  }
  func.func @transform_3(%arg0: i32) -> (i32, i32) {
    %c0_i32 = arith.constant 0 : i32
    %c0_i32_0 = arith.constant 0 : i32
    %c0_i32_1 = arith.constant 0 : i32
    return %c0_i32, %c0_i32_0 : i32, i32
  }
  func.func @transform_4(%arg0: i32) -> (i32, i32) {
    %c0_i32 = arith.constant 0 : i32
    %c0_i32_0 = arith.constant 0 : i32
    %c0_i32_1 = arith.constant 0 : i32
    return %c0_i32, %c0_i32_0 : i32, i32
  }
  func.func @transform_5(%arg0: i32) -> (i32, i32) {
    %c0_i32 = arith.constant 0 : i32
    %c0_i32_0 = arith.constant 0 : i32
    return %c0_i32, %arg0 : i32, i32
  }
}

</mosaic_0001>

<llo_original>
// kernel: tpu_custom_call.1
$region0: #{tpu_custom_call.1}
  #allocation0 [shape = 'u32[]', space=smem, size = 0x4, offset = 0x4, fixed_abs, tag = 'smem constant byte address 0x4 - core index']
  #allocation1 [shape = 'u32[144,128]{1,0:T(1,128)}', space=vmem, size = 0x12000, scoped, tag = 'internal scratch']
  #allocation2 [shape = 'f32[1,1]{1,0:T(1,128)S(1)}', space=vmem, size = 0x200, scoped, tag = 'scoped memory for tpu_custom_call.1']
  %s0 = inlined_call_operand.vmem [shape: f32[4,8], index: 0, kind: input, shape index: {}]
  %s1 = inlined_call_operand.vmem [shape: f32[32,4], index: 1, kind: input, shape index: {}]
  %s2 = inlined_call_operand.vmem [shape: f32[32,1], index: 2, kind: input, shape index: {}]
  %s3 = inlined_call_operand.vmem [shape: f32[32,1], index: 3, kind: input, shape index: {}]
  %s4 = inlined_call_operand.<no memory space> [shape: f32[1,1], index: 4, kind: input, shape index: {}]
  %s5 = inlined_call_operand.hbm [shape: f32[1,8], index: 5, kind: output, shape index: {}]
  %s6 = sld [smem:[#allocation0]]
  $region30: #{tpu_custom_call.1} parent=0
    _
  %s8 = ssub.s32 1, %s6
  %s9 = scalar_select 0, %s8, %s6
  %v10 = vstv %s4
  %11 = vst [vmem:[#allocation2] sm:$0x1] %v10
  $region1: #{tpu_custom_call.1} parent=0
    #allocation3 [shape = 'u8[512]{0}', space=vmem, size = 0x400, scoped, tag = 'output window, operand 0, single buffered']
    #allocation4 [shape = 's32[1]{0}', space=sflag, size = 0x4, scoped, tag = 'scoped memory for tpu_custom_call.1']
    %12 = vsyncpa [#allocation4], 0
    // Predicated region
    $region2: #{tpu_custom_call.1} parent=1 // pred_check
      _
    $region3: #{tpu_custom_call.1} parent=1 // pred_check_branch
      %14 = sbr.rel (0) target = $region5
    $region4: #{tpu_custom_call.1} parent=1 // pred_region
      _
    $region5: #{tpu_custom_call.1} parent=1 // pred_fallthru
      _
    // Predicated region
    $region6: #{tpu_custom_call.1} parent=1 // pred_check
      _
    $region7: #{tpu_custom_call.1} parent=1 // pred_check_branch
      %16 = sbr.rel (0) target = $region9
    $region8: #{tpu_custom_call.1} parent=1 // pred_region
      _
    $region9: #{tpu_custom_call.1} parent=1 // pred_fallthru
      _
    // Predicated region
    $region10: #{tpu_custom_call.1} parent=1 // pred_check
      _
    $region11: #{tpu_custom_call.1} parent=1 // pred_check_branch
      %18 = sbr.rel (0) target = $region13
    $region12: #{tpu_custom_call.1} parent=1 // pred_region
      _
    $region13: #{tpu_custom_call.1} parent=1 // pred_fallthru
      _
    // Predicated region
    $region14: #{tpu_custom_call.1} parent=1 // pred_check
      _
    $region15: #{tpu_custom_call.1} parent=1 // pred_check_branch
      %20 = sbr.rel (0) target = $region17
    $region16: #{tpu_custom_call.1} parent=1 // pred_region
      _
    $region17: #{tpu_custom_call.1} parent=1 // pred_fallthru
      _
    // Predicated region
    $region18: #{tpu_custom_call.1} parent=1 // pred_check
      _
    $region19: #{tpu_custom_call.1} parent=1 // pred_check_branch
      %22 = sbr.rel (0) target = $region21
    $region20: #{tpu_custom_call.1} parent=1 // pred_region
      _
    $region21: #{tpu_custom_call.1} parent=1 // pred_fallthru
      _
    %v23 = vld [vmem:[%s1] sm:$0xff]
    %v24 = vld [vmem:[%s1 + $0x8] sm:$0xff]
    %v25 = vld [vmem:[%s1 + $0x10] sm:$0xff]
    %v26 = vld [vmem:[%s1 + $0x18] sm:$0xff]
    %v27 = vld [vmem:[%s0] sm:$0xf]
    %v28 = vld [vmem:[%s2] sm:$0xff]
    %v29 = vld [vmem:[%s2 + $0x8] sm:$0xff]
    %v30 = vld [vmem:[%s2 + $0x10] sm:$0xff]
    %v31 = vld [vmem:[%s2 + $0x18] sm:$0xff]
    %33 = vset.pattern.permute.xlu0 0
    %34 = vperm.xlu0 %33, %v28
    %v35 = vpop.permute.xlu0 %34
    %38 = vset.pattern.permute.xlu0 0
    %39 = vperm.xlu0 %38, %v29
    %v40 = vpop.permute.xlu0 %39
    %43 = vset.pattern.permute.xlu0 0
    %44 = vperm.xlu0 %43, %v30
    %v45 = vpop.permute.xlu0 %44
    %48 = vset.pattern.permute.xlu0 0
    %49 = vperm.xlu0 %48, %v31
    %v50 = vpop.permute.xlu0 %49
    %vm52 = vcmask 31744
    %v54 = vsel %vm52, %v23, 0
    %v57 = vsel %vm52, %v24, 0
    %v60 = vsel %vm52, %v25, 0
    %v63 = vsel %vm52, %v26, 0
    %vm65 = vcmask 1043456
    %v67 = vsel %vm65, %v27, 0
    %69 = vmatprep.subr.mxu0 0.0
    %70 = vmatpush1.msra.mxu0 0.0
    %71 = vmatprep.subr.mxu0 0.0
    %72 = vmatpush1.msra.mxu0 0.0
    %73 = vmatprep.subr.mxu0 0.0
    %74 = vmatpush1.msra.mxu0 0.0
    %75 = vmatprep.subr.mxu0 0.0
    %76 = vmatpush1.msra.mxu0 0.0
    %77 = vmatprep.subr.mxu0 0.0
    %78 = vmatpush1.msra.mxu0 0.0
    %79 = vmatprep.subr.mxu0 0.0
    %80 = vmatpush1.msra.mxu0 0.0
    %81 = vmatprep.subr.mxu0 0.0
    %82 = vmatpush1.msra.mxu0 0.0
    %83 = vmatprep.subr.mxu0 0.0
    %84 = vmatpush1.msra.mxu0 0.0
    %85 = vmatprep.subr.mxu0 0.0
    %86 = vmatpush1.msra.mxu0 0.0
    %87 = vmatprep.subr.mxu0 0.0
    %88 = vmatpush1.msra.mxu0 0.0
    %89 = vmatprep.subr.mxu0 0.0
    %90 = vmatpush1.msra.mxu0 0.0
    %91 = vmatprep.subr.mxu0 0.0
    %92 = vmatpush1.msra.mxu0 0.0
    %93 = vmatprep.subr.mxu0 0.0
    %94 = vmatpush1.msra.mxu0 0.0
    %95 = vmatprep.subr.mxu0 0.0
    %96 = vmatpush1.msra.mxu0 0.0
    %97 = vmatprep.subr.mxu0 0.0
    %98 = vmatpush1.msra.mxu0 0.0
    %99 = vmatprep.subr.mxu0 0.0
    %100 = vmatpush1.msra.mxu0 %v67
    %101 = vmatprep.subr.mxu0 0.0
    %102 = vmatpush2.msra.mxu0 0.0
    %103 = vmatprep.subr.mxu0 0.0
    %104 = vmatpush2.msra.mxu0 0.0
    %105 = vmatprep.subr.mxu0 0.0
    %106 = vmatpush2.msra.mxu0 0.0
    %107 = vmatprep.subr.mxu0 0.0
    %108 = vmatpush2.msra.mxu0 0.0
    %109 = vmatprep.subr.mxu0 0.0
    %110 = vmatpush2.msra.mxu0 0.0
    %111 = vmatprep.subr.mxu0 0.0
    %112 = vmatpush2.msra.mxu0 0.0
    %113 = vmatprep.subr.mxu0 0.0
    %114 = vmatpush2.msra.mxu0 0.0
    %115 = vmatprep.subr.mxu0 0.0
    %116 = vmatpush2.msra.mxu0 0.0
    %117 = vmatprep.subr.mxu0 0.0
    %118 = vmatpush2.msra.mxu0 0.0
    %119 = vmatprep.subr.mxu0 0.0
    %120 = vmatpush2.msra.mxu0 0.0
    %121 = vmatprep.subr.mxu0 0.0
    %122 = vmatpush2.msra.mxu0 0.0
    %123 = vmatprep.subr.mxu0 0.0
    %124 = vmatpush2.msra.mxu0 0.0
    %125 = vmatprep.subr.mxu0 0.0
    %126 = vmatpush2.msra.mxu0 0.0
    %127 = vmatprep.subr.mxu0 0.0
    %128 = vmatpush2.msra.mxu0 0.0
    %129 = vmatprep.subr.mxu0 0.0
    %130 = vmatpush2.msra.mxu0 0.0
    %131 = vmatprep.subr.mxu0 0.0
    %132 = vmatpush2.msra.mxu0 0.0
    %133 = vmatprep.mubr.f32.mxu0 0.0
    %134 = vmatmul.mubr.f32.gmra.mxu0 %v54
    %v135 = vpop.f32.mrf.mxu0
    %v136 = vadd.f32 %v35, %v135
    %v137 = vpop.f32.mrf.mxu0
    %138 = vmatprep.mubr.f32.mxu0 0.0
    %139 = vmatmul.mubr.f32.gmra.mxu0 %v57
    %v140 = vpop.f32.mrf.mxu0
    %v141 = vadd.f32 %v40, %v140
    %v142 = vpop.f32.mrf.mxu0
    %143 = vmatprep.mubr.f32.mxu0 0.0
    %144 = vmatmul.mubr.f32.gmra.mxu0 %v60
    %v145 = vpop.f32.mrf.mxu0
    %v146 = vadd.f32 %v45, %v145
    %v147 = vpop.f32.mrf.mxu0
    %148 = vmatprep.mubr.f32.mxu0 0.0
    %149 = vmatmul.mubr.f32.gmra.mxu0 %v63
    %v150 = vpop.f32.mrf.mxu0
    %v151 = vadd.f32 %v50, %v150
    %v152 = vpop.f32.mrf.mxu0
    %153 = vdwg.mxu0
    %v154 = vmax.f32 %v136, 0.0
    %v155 = vmax.f32 %v141, 0.0
    %v156 = vmax.f32 %v146, 0.0
    %v157 = vmax.f32 %v151, 0.0
    %v158 = vld [vmem:[%s3] sm:$0xff]
    %v159 = vld [vmem:[%s3 + $0x8] sm:$0xff]
    %v160 = vld [vmem:[%s3 + $0x10] sm:$0xff]
    %v161 = vld [vmem:[%s3 + $0x18] sm:$0xff]
    %163 = vset.pattern.permute.xlu0 0
    %164 = vperm.xlu0 %163, %v158
    %v165 = vpop.permute.xlu0 %164
    %168 = vset.pattern.permute.xlu0 0
    %169 = vperm.xlu0 %168, %v159
    %v170 = vpop.permute.xlu0 %169
    %173 = vset.pattern.permute.xlu0 0
    %174 = vperm.xlu0 %173, %v160
    %v175 = vpop.permute.xlu0 %174
    %178 = vset.pattern.permute.xlu0 0
    %179 = vperm.xlu0 %178, %v161
    %v180 = vpop.permute.xlu0 %179
    %v182 = vmul.f32 %v154, %v165
    %v183 = vmul.f32 %v155, %v170
    %v184 = vmul.f32 %v156, %v175
    %v185 = vmul.f32 %v157, %v180
    %vm186 = vcmask 64512
    %v187 = vsel %vm186, %v182, 0.0
    %v188 = vsel %vm186, %v183, 0.0
    %v189 = vadd.f32 %v187, %v188
    %v190 = vsel %vm186, %v184, 0.0
    %v191 = vadd.f32 %v189, %v190
    %v192 = vsel %vm186, %v185, 0.0
    %v193 = vadd.f32 %v191, %v192
    %v194 = vrot.slane %v193, 4
    %v195 = vadd.f32 %v193, %v194
    %v196 = vrot.slane %v195, 2
    %v197 = vadd.f32 %v195, %v196
    %v198 = vrot.slane %v197, 1
    %v199 = vadd.f32 %v197, %v198
    %v200 = vld [vmem:[#allocation2] sm:$0x1]
    %202 = vset.pattern.permute.xlu0 0
    %203 = vperm.xlu0 %202, %v200
    %v204 = vpop.permute.xlu0 %203
    %v206 = vlaneseq
    %v207 = vshrl.u32 %v206, 7
    %v208 = vsub.s32 0, %v207
    %v209 = vrot.slane %v204, %v208
    %v210 = vadd.f32 %v199, %v209
    %vm211 = vcmask 57344
    %212 = vst.msk [vmem:[#allocation3] sm:$0x1] %vm211, %v210
    // Predicated region
    $region22: #{tpu_custom_call.1} parent=1 // pred_check
      _
    $region23: #{tpu_custom_call.1} parent=1 // pred_check_branch
      %214 = sbr.rel (0) target = $region25
    $region24: #{tpu_custom_call.1} parent=1 // pred_region
      %s216 = ssub.s32 16, 16
      %217 = vsyncadd [#allocation4], %s216
      %s219 = sshll.u32 [#allocation3], 4
      %s220 = int_to_ptr.vmem [resolvable:$true] %s219
      %222 = dma.vmem_to_hbm [thread:$0]  %s220, 16, %s5, [#allocation4]
    $region25: #{tpu_custom_call.1} parent=1 // pred_fallthru
      _
    // Predicated region
    $region26: #{tpu_custom_call.1} parent=1 // pred_check
      _
    $region27: #{tpu_custom_call.1} parent=1 // pred_check_branch
      %224 = sbr.rel (0) target = $region29
    $region28: #{tpu_custom_call.1} parent=1 // pred_region
      %225 = dma.done [#allocation4], 16
    $region29: #{tpu_custom_call.1} parent=1 // pred_fallthru
      _
    %226 = vsyncpa [#allocation4], 1

</llo_original>
